<compile_context>
chip_gen: v7x
topology: tpu7x:2x2x1
jax: 0.10.0
libtpu: 0.0.40
codegen_flags: <defaults>
</compile_context>

<pallas_src>
import functools

import jax
import jax.numpy as jnp
from jax.experimental import pallas as pl
from jax.experimental.pallas import tpu as pltpu


# ----------------------------- small config -----------------------------
class Cfg:
    vocab_size = 128
    hidden_size = 64
    num_attention_heads = 4
    num_key_value_heads = 2
    head_dim = 16                     # hidden_size // num_attention_heads
    moe_intermediate_size = 32
    num_experts = 4
    num_experts_per_tok = 2
    num_shared_experts = 1
    norm_topk_prob = True
    rms_norm_eps = 1e-6
    rope_theta = 10000.0
    num_hidden_layers = 2
    embedding_dropout = 0.0           # eval: no-op


def _vm():
    return pl.BlockSpec(memory_space=pltpu.MemorySpace.VMEM)


def _pick_tt(T):
    # Prefer >=2 token tiles (v7x has 2 TensorCores), tile multiple of 8, <=128.
    for cand in (128, 64, 32, 16, 8):
        if cand <= T // 2 and T % cand == 0:
            return cand
    return T  # toy shapes: a single full-length tile


# ===================== kernel A: fused attention block =====================
def _attn_block_kernel(*refs, num_heads, num_kv_heads, head_dim, eps, scale,
                       add_residual):
    if add_residual:
        (hidden_ref, residual_ref, ln1_ref, ln2_ref, cos_ref, sin_ref,
         wqkv_ref, wo_ref, gate_ref,
         normed_ref, res_out_ref, logits_ref) = refs
    else:
        (hidden_ref, ln1_ref, ln2_ref, cos_ref, sin_ref,
         wqkv_ref, wo_ref, gate_ref,
         normed_ref, res_out_ref, logits_ref) = refs

    x = hidden_ref[...]
    if add_residual:
        x = x + residual_ref[...]          # fused residual add (skipped layer 0)

    # ---- input RMSNorm (f32 math, bf16 MXU input) ----
    var = jnp.mean(x * x, axis=-1, keepdims=True)
    n = (x * jax.lax.rsqrt(var + eps) * ln1_ref[...]).astype(jnp.bfloat16)

    # ---- fused QKV projection (bf16 MXU, f32 accum) ----
    qkv = jnp.dot(n, wqkv_ref[...], preferred_element_type=jnp.float32)

    T, W = qkv.shape
    D = head_dim
    half = D // 2
    group = num_heads // num_kv_heads
    q_sz = num_heads * D
    kv_sz = num_kv_heads * D
    H = x.shape[-1]

    # ---- slab-level neox RoPE over the whole QKV slab ----------------------
    # rotate_half per head: take x[c+half] on the first half of each head's
    # columns and x[c-half] on the second half (two lane rolls + a select);
    # the neox sign lives in sin_ref; V columns pass through (cos=1, sin=0).
    col = jax.lax.broadcasted_iota(jnp.int32, (T, W), 1)
    first_half = (col % D) < half
    rot = jnp.where(first_half,
                    pltpu.roll(qkv, W - half, 1),   # -> x[c + half]
                    pltpu.roll(qkv, half, 1))       # -> x[c - half]
    qkv_r = qkv * cos_ref[...] + rot * sin_ref[...]

    # causal mask for the (group*T, T) row-stacked query heads
    row = jax.lax.broadcasted_iota(jnp.int32, (group * T, T), 0) % T
    colt = jax.lax.broadcasted_iota(jnp.int32, (group * T, T), 1)
    causal = colt <= row

    # ---- GQA attention: one QK^T dot and one PV dot per KV head ------------
    attn_out = jnp.zeros((T, H), jnp.float32)
    for g in range(num_kv_heads):
        q_stack = jnp.concatenate(
            [qkv_r[:, (g * group + i) * D:(g * group + i + 1) * D]
             for i in range(group)], axis=0)
        q_stack = (q_stack * scale).astype(jnp.bfloat16)           # (group*T, D)
        k_g = qkv_r[:, q_sz + g * D:q_sz + (g + 1) * D].astype(jnp.bfloat16)
        v_g = qkv_r[:, q_sz + kv_sz + g * D:
                    q_sz + kv_sz + (g + 1) * D].astype(jnp.bfloat16)

        s = jax.lax.dot_general(q_stack, k_g, (((1,), (1,)), ((), ())),
                                preferred_element_type=jnp.float32)
        s = jnp.where(causal, s, -1e30)
        m = jnp.max(s, axis=-1, keepdims=True)
        p = jnp.exp(s - m)
        l = jnp.sum(p, axis=-1, keepdims=True)
        p = p * pl.reciprocal(l, approx=False)          # exact (torch parity)
        ctx = jnp.dot(p.astype(jnp.bfloat16), v_g,
                      preferred_element_type=jnp.float32)           # (group*T, D)

        # per-head accumulation into the output projection (no lane concat)
        for i in range(group):
            h = g * group + i
            attn_out = attn_out + jnp.dot(
                ctx[i * T:(i + 1) * T].astype(jnp.bfloat16),
                wo_ref[h * D:(h + 1) * D, :],
                preferred_element_type=jnp.float32)

    # ---- post-attention RMSNorm (fused residual add) + router gate ---------
    x2 = attn_out + x
    res_out_ref[...] = x2                               # residual stream: f32
    var2 = jnp.mean(x2 * x2, axis=-1, keepdims=True)
    normed = x2 * jax.lax.rsqrt(var2 + eps) * ln2_ref[...]
    normed_bf16 = normed.astype(jnp.bfloat16)
    normed_ref[...] = normed_bf16                       # activation: bf16
    logits_ref[...] = jnp.dot(normed_bf16, gate_ref[...],
                              preferred_element_type=jnp.float32)


def attn_block(hidden, residual, ln1, ln2, cos_slab, sin_slab, wqkv, wo, gate,
               cfg, add_residual):
    T, H = hidden.shape
    E = gate.shape[-1]
    kern = functools.partial(
        _attn_block_kernel,
        num_heads=cfg.num_attention_heads,
        num_kv_heads=cfg.num_key_value_heads,
        head_dim=cfg.head_dim,
        eps=cfg.rms_norm_eps,
        scale=cfg.head_dim ** -0.5,
        add_residual=add_residual)
    args = [hidden]
    if add_residual:
        args.append(residual)
    args += [ln1.reshape(1, H), ln2.reshape(1, H), cos_slab, sin_slab,
             wqkv, wo, gate]
    return pl.pallas_call(
        kern,
        out_shape=(jax.ShapeDtypeStruct((T, H), jnp.bfloat16),   # normed
                   jax.ShapeDtypeStruct((T, H), jnp.float32),    # residual
                   jax.ShapeDtypeStruct((T, E), jnp.float32)),   # router logits
        in_specs=[_vm()] * len(args),
        out_specs=(_vm(), _vm(), _vm()),
        compiler_params=pltpu.CompilerParams(
            vmem_limit_bytes=32 * 1024 * 1024),
    )(*args)


# ===================== kernel B: fused MoE block =====================
def _moe_block_kernel(cnt_ref, dmi_ref, x_ref, rw_ref,
                      swg_ref, swu_ref, swd_ref,
                      wg_ref, wu_ref, wd_ref,
                      o_ref, acc_ref):
    t = pl.program_id(0)
    e = pl.program_id(1)
    xb = x_ref[...]                               # already bf16

    # shared expert: computed once per token tile, initializes the accumulator
    @pl.when(e == 0)
    def _():
        g = jnp.dot(xb, swg_ref[...], preferred_element_type=jnp.float32)
        u = jnp.dot(xb, swu_ref[...], preferred_element_type=jnp.float32)
        hmid = (jax.nn.silu(g) * u).astype(jnp.bfloat16)
        acc_ref[...] = jnp.dot(hmid, swd_ref[...],
                               preferred_element_type=jnp.float32)

    # routed expert e: skip all MXU work if no token in THIS tile routed to it
    @pl.when(cnt_ref[t, e] > 0)
    def _():
        g = jnp.dot(xb, wg_ref[0], preferred_element_type=jnp.float32)
        u = jnp.dot(xb, wu_ref[0], preferred_element_type=jnp.float32)
        # routing weight column e, selected from the tile-resident (tt, E) block
        lane = jax.lax.broadcasted_iota(jnp.int32, rw_ref.shape, 1)
        w_col = jnp.sum(jnp.where(lane == e, rw_ref[...], 0.0),
                        axis=1, keepdims=True)                     # (tt, 1)
        hmid = (jax.nn.silu(g) * u * w_col).astype(jnp.bfloat16)
        acc_ref[...] += jnp.dot(hmid, wd_ref[0],
                                preferred_element_type=jnp.float32)

    @pl.when(e == pl.num_programs(1) - 1)
    def _():
        o_ref[...] = acc_ref[...]


def moe_block(x_bf16, rw_dense, counts, dma_idx,
              swg, swu, swd, wg, wu, wd, tt):
    T, H = x_bf16.shape
    E, _, I = wg.shape
    Ish = swg.shape[1]
    n_tiles = T // tt

    grid_spec = pltpu.PrefetchScalarGridSpec(
        num_scalar_prefetch=2,                     # counts, dma_idx
        grid=(n_tiles, E),                         # reduction (expert) axis last
        in_specs=[
            pl.BlockSpec((tt, H), lambda t, e, cnt, dmi: (t, 0)),     # x (bf16)
            pl.BlockSpec((tt, E), lambda t, e, cnt, dmi: (t, 0)),     # routing w
            pl.BlockSpec((H, Ish), lambda t, e, cnt, dmi: (0, 0)),    # shared g
            pl.BlockSpec((H, Ish), lambda t, e, cnt, dmi: (0, 0)),    # shared u
            pl.BlockSpec((Ish, H), lambda t, e, cnt, dmi: (0, 0)),    # shared d
            # skipped experts reuse the previous expert's block -> no re-DMA
            pl.BlockSpec((1, H, I), lambda t, e, cnt, dmi: (dmi[t, e], 0, 0)),
            pl.BlockSpec((1, H, I), lambda t, e, cnt, dmi: (dmi[t, e], 0, 0)),
            pl.BlockSpec((1, I, H), lambda t, e, cnt, dmi: (dmi[t, e], 0, 0)),
        ],
        out_specs=pl.BlockSpec((tt, H), lambda t, e, cnt, dmi: (t, 0)),
        scratch_shapes=[pltpu.VMEM((tt, H), jnp.float32)],
    )
    return pl.pallas_call(
        _moe_block_kernel,
        out_shape=jax.ShapeDtypeStruct((T, H), jnp.float32),
        grid_spec=grid_spec,
        compiler_params=pltpu.CompilerParams(
            dimension_semantics=("parallel", "arbitrary"),
            vmem_limit_bytes=32 * 1024 * 1024),
    )(counts, dma_idx, x_bf16, rw_dense, swg, swu, swd, wg, wu, wd)


# ===================== final RMSNorm (fused residual add) =====================
def _final_norm_kernel(hidden_ref, residual_ref, w_ref, o_ref, *, eps):
    x = hidden_ref[...] + residual_ref[...]
    var = jnp.mean(x * x, axis=-1, keepdims=True)
    o_ref[...] = x * jax.lax.rsqrt(var + eps) * w_ref[...]


def final_norm(hidden, residual, w, eps):
    T, H = hidden.shape
    kern = functools.partial(_final_norm_kernel, eps=eps)
    return pl.pallas_call(
        kern,
        out_shape=jax.ShapeDtypeStruct((T, H), jnp.float32),
        in_specs=[_vm(), _vm(), _vm()],
        out_specs=_vm(),
    )(hidden, residual, w.reshape(1, H))


# ----------------------------- JAX glue -----------------------------
def rope_slabs(pos, cfg):
    """Precompute (T, Wqkv) cos/sin slabs; neox sign folded into sin, V cols
    pass through (cos=1, sin=0)."""
    D = cfg.head_dim
    half = D // 2
    nh = cfg.num_attention_heads
    nkv = cfg.num_key_value_heads
    T = pos.shape[0]
    inv_freq = 1.0 / (cfg.rope_theta **
                      (jnp.arange(0, half, dtype=jnp.float32) * 2.0 / D))
    freqs = pos.astype(jnp.float32)[:, None] * inv_freq[None, :]   # (T, half)
    cos_h, sin_h = jnp.cos(freqs), jnp.sin(freqs)
    head_cos = jnp.concatenate([cos_h, cos_h], axis=-1)            # (T, D)
    head_sin = jnp.concatenate([-sin_h, sin_h], axis=-1)           # (T, D)
    cos_slab = jnp.concatenate(
        [jnp.tile(head_cos, (1, nh + nkv)), jnp.ones((T, nkv * D), jnp.float32)],
        axis=-1)
    sin_slab = jnp.concatenate(
        [jnp.tile(head_sin, (1, nh + nkv)), jnp.zeros((T, nkv * D), jnp.float32)],
        axis=-1)
    return cos_slab, sin_slab


def topk_routing(router_logits, top_k, renormalize, tt):
    # vLLM fused_topk semantics: softmax over all experts, take top_k,
    # optionally renormalize so selected weights sum to 1.
    T, E = router_logits.shape
    probs = jax.nn.softmax(router_logits.astype(jnp.float32), axis=-1)
    topk_w, topk_idx = jax.lax.top_k(probs, top_k)
    if renormalize:
        topk_w = topk_w / jnp.sum(topk_w, axis=-1, keepdims=True)
    dense = jnp.zeros((T, E), jnp.float32)
    dense = dense.at[jnp.arange(T)[:, None], topk_idx].set(topk_w)  # (T, E)

    n_tiles = T // tt
    counts = jnp.sum((dense > 0.0).reshape(n_tiles, tt, E),
                     axis=1).astype(jnp.int32)                      # (tiles, E)
    nz = counts > 0
    # dma_idx[t, e] = last expert <= e with routed tokens in tile t (so skipped
    # experts reuse the resident weight block and avoid re-DMA).
    dma_idx = jax.lax.cummax(
        jnp.where(nz, jnp.arange(E, dtype=jnp.int32)[None, :], 0), axis=1)
    return dense, counts, dma_idx.astype(jnp.int32)


def init_params(key, cfg):
    def nrm(k, shape, scale=0.02, dtype=jnp.bfloat16):
        return (scale * jax.random.normal(k, shape, jnp.float32)).astype(dtype)

    H = cfg.hidden_size
    D = cfg.head_dim
    nh = cfg.num_attention_heads
    nkv = cfg.num_key_value_heads
    E = cfg.num_experts
    I = cfg.moe_intermediate_size
    I_sh = cfg.moe_intermediate_size * cfg.num_shared_experts

    keys = jax.random.split(key, 2 + cfg.num_hidden_layers)
    params = {
        'embed': nrm(keys[0], (cfg.vocab_size, H), dtype=jnp.float32),
        'final_norm': jnp.ones((H,), jnp.float32),
        'layers': [],
    }
    for li in range(cfg.num_hidden_layers):
        lk = jax.random.split(keys[2 + li], 10)
        params['layers'].append({
            'input_ln': jnp.ones((H,), jnp.float32),
            'post_ln': jnp.ones((H,), jnp.float32),
            'wqkv': nrm(lk[0], (H, (nh + 2 * nkv) * D)),
            'wo': nrm(lk[1], (nh * D, H)),
            'gate': nrm(lk[2], (H, E)),
            'expert_wg': nrm(lk[3], (E, H, I)),
            'expert_wu': nrm(lk[4], (E, H, I)),
            'expert_wd': nrm(lk[5], (E, I, H)),
            'shared_wg': nrm(lk[6], (H, I_sh)),
            'shared_wu': nrm(lk[7], (H, I_sh)),
            'shared_wd': nrm(lk[8], (I_sh, H)),
        })
    return params


def bailing_moe_forward(params, input_ids, position_ids, cfg):
    # word embeddings (gather) + dropout (eval no-op)
    hidden = params['embed'][input_ids]                 # (T, H) f32
    residual = None                                     # layer 0 skips the add
    cos_slab, sin_slab = rope_slabs(position_ids, cfg)
    T = hidden.shape[0]
    tt = _pick_tt(T)

    for li, layer in enumerate(params['layers']):
        # fused: [residual add] + input RMSNorm + attention + post-attn RMSNorm
        #        + router gate GEMM
        normed_bf16, residual, router_logits = attn_block(
            hidden, residual, layer['input_ln'], layer['post_ln'],
            cos_slab, sin_slab, layer['wqkv'], layer['wo'], layer['gate'],
            cfg, add_residual=(li > 0))

        # top-k routing in plain XLA (tiny, sort/scatter-heavy)
        rw_dense, counts, dma_idx = topk_routing(
            router_logits, cfg.num_experts_per_tok, cfg.norm_topk_prob, tt)

        # fused: shared expert + routed experts (token_tile x expert grid)
        hidden = moe_block(normed_bf16, rw_dense, counts, dma_idx,
                           layer['shared_wg'], layer['shared_wu'],
                           layer['shared_wd'],
                           layer['expert_wg'], layer['expert_wu'],
                           layer['expert_wd'], tt)

    # final RMSNorm with residual add
    return final_norm(hidden, residual, params['final_norm'],
                      cfg.rms_norm_eps)


# ----------------------------- main -----------------------------
if __name__ == "__main__":
    cfg = Cfg()
    key = jax.random.PRNGKey(0)
    pkey, ikey = jax.random.split(key)

    params = init_params(pkey, cfg)

    T = 8
    input_ids = jax.random.randint(ikey, (T,), 0, cfg.vocab_size,
                                   dtype=jnp.int32)
    position_ids = jnp.arange(T, dtype=jnp.int32)

    out = bailing_moe_forward(params, input_ids, position_ids, cfg)
    out = jax.block_until_ready(out)
    assert out.shape == (T, cfg.hidden_size)
    assert jnp.all(jnp.isfinite(out))
    print("KERNEL_OK")
</pallas_src>

<mosaic_0001>
module attributes {stable_mosaic.version = 11 : i64} {
  func.func @_attn_block_kernel(%arg0: memref<8x64xf32, #tpu.memory_space<vmem>>, %arg1: memref<1x64xf32, #tpu.memory_space<vmem>>, %arg2: memref<1x64xf32, #tpu.memory_space<vmem>>, %arg3: memref<8x128xf32, #tpu.memory_space<vmem>>, %arg4: memref<8x128xf32, #tpu.memory_space<vmem>>, %arg5: memref<64x128xbf16, #tpu.memory_space<vmem>>, %arg6: memref<64x64xbf16, #tpu.memory_space<vmem>>, %arg7: memref<64x4xbf16, #tpu.memory_space<vmem>>, %arg8: memref<8x64xbf16, #tpu.memory_space<vmem>>, %arg9: memref<8x64xf32, #tpu.memory_space<vmem>>, %arg10: memref<8x4xf32, #tpu.memory_space<vmem>>) attributes {dimension_semantics = [], scalar_prefetch = 0 : i64, scratch_operands = 0 : i64, tpu.core_type = #tpu.core_type<tc>} {
    %c0 = arith.constant 0 : index
    %c0_0 = arith.constant 0 : index
    %0 = vector.load %arg0[%c0, %c0_0] : memref<8x64xf32, #tpu.memory_space<vmem>>, vector<8x64xf32>
    %1 = arith.mulf %0, %0 : vector<8x64xf32>
    %cst = arith.constant dense<0.000000e+00> : vector<8xf32>
    %2 = vector.multi_reduction <add>, %1, %cst [1] : vector<8x64xf32> to vector<8xf32>
    %3 = vector.shape_cast %2 : vector<8xf32> to vector<8x1xf32>
    %cst_1 = arith.constant 6.400000e+01 : f32
    %4 = vector.broadcast %cst_1 : f32 to vector<8x1xf32>
    %5 = arith.divf %3, %4 : vector<8x1xf32>
    %cst_2 = arith.constant 9.99999997E-7 : f32
    %6 = vector.broadcast %cst_2 : f32 to vector<8x1xf32>
    %7 = arith.addf %5, %6 : vector<8x1xf32>
    %8 = math.rsqrt %7 : vector<8x1xf32>
    %9 = vector.broadcast %8 : vector<8x1xf32> to vector<8x64xf32>
    %10 = arith.mulf %0, %9 : vector<8x64xf32>
    %c0_3 = arith.constant 0 : index
    %c0_4 = arith.constant 0 : index
    %11 = vector.load %arg1[%c0_3, %c0_4] : memref<1x64xf32, #tpu.memory_space<vmem>>, vector<1x64xf32>
    %12 = vector.broadcast %11 : vector<1x64xf32> to vector<8x64xf32>
    %13 = arith.mulf %10, %12 : vector<8x64xf32>
    %14 = arith.truncf %13 : vector<8x64xf32> to vector<8x64xbf16>
    %c0_5 = arith.constant 0 : index
    %c0_6 = arith.constant 0 : index
    %15 = vector.load %arg5[%c0_5, %c0_6] : memref<64x128xbf16, #tpu.memory_space<vmem>>, vector<64x128xbf16>
    %cst_7 = arith.constant dense<0.000000e+00> : vector<8x128xf32>
    %16 = tpu.matmul %14, %15, %cst_7 {dimension_numbers = #tpu.dot_dimension_numbers<[1], [0], [0], [1], [0, 0, 1, 1], [], []>} : vector<8x64xbf16>, vector<64x128xbf16>, vector<8x128xf32> -> vector<8x128xf32>
    %17 = tpu.iota {dimensions = array<i32: 1>} : vector<8x128xi32>
    %c16_i32 = arith.constant 16 : i32
    %c0_i32 = arith.constant 0 : i32
    %18 = arith.cmpi eq, %c16_i32, %c0_i32 : i32
    %c1_i32 = arith.constant 1 : i32
    %19 = arith.select %18, %c1_i32, %c16_i32 : i32
    %20 = vector.broadcast %19 : i32 to vector<8x128xi32>
    %21 = arith.remsi %17, %20 : vector<8x128xi32>
    %c0_i32_8 = arith.constant 0 : i32
    %22 = vector.broadcast %c0_i32_8 : i32 to vector<8x128xi32>
    %23 = arith.cmpi ne, %21, %22 : vector<8x128xi32>
    %c0_i32_9 = arith.constant 0 : i32
    %24 = vector.broadcast %c0_i32_9 : i32 to vector<8x128xi32>
    %25 = arith.cmpi slt, %21, %24 : vector<8x128xi32>
    %c0_i32_10 = arith.constant 0 : i32
    %26 = arith.cmpi slt, %19, %c0_i32_10 : i32
    %27 = vector.broadcast %26 : i1 to vector<8x128xi1>
    %28 = vector.broadcast %27 : vector<8x128xi1> to vector<8x128xi1>
    %29 = arith.xori %25, %28 : vector<8x128xi1>
    %30 = arith.andi %29, %23 : vector<8x128xi1>
    %31 = vector.broadcast %19 : i32 to vector<8x128xi32>
    %32 = arith.addi %21, %31 : vector<8x128xi32>
    %33 = arith.select %30, %32, %21 : vector<8x128xi1>, vector<8x128xi32>
    %c8_i32 = arith.constant 8 : i32
    %34 = vector.broadcast %c8_i32 : i32 to vector<8x128xi32>
    %35 = arith.cmpi slt, %33, %34 : vector<8x128xi32>
    %c120_i32 = arith.constant 120 : i32
    %36 = tpu.dynamic_rotate %16 by %c120_i32 dim 1 : vector<8x128xf32>, i32 -> vector<8x128xf32>
    %c8_i32_11 = arith.constant 8 : i32
    %37 = tpu.dynamic_rotate %16 by %c8_i32_11 dim 1 : vector<8x128xf32>, i32 -> vector<8x128xf32>
    %38 = arith.select %35, %36, %37 : vector<8x128xi1>, vector<8x128xf32>
    %c0_12 = arith.constant 0 : index
    %c0_13 = arith.constant 0 : index
    %39 = vector.load %arg3[%c0_12, %c0_13] : memref<8x128xf32, #tpu.memory_space<vmem>>, vector<8x128xf32>
    %40 = arith.mulf %16, %39 : vector<8x128xf32>
    %c0_14 = arith.constant 0 : index
    %c0_15 = arith.constant 0 : index
    %41 = vector.load %arg4[%c0_14, %c0_15] : memref<8x128xf32, #tpu.memory_space<vmem>>, vector<8x128xf32>
    %42 = arith.mulf %38, %41 : vector<8x128xf32>
    %43 = arith.addf %40, %42 : vector<8x128xf32>
    %44 = tpu.iota {dimensions = array<i32: 0>} : vector<16x8xi32>
    %c8_i32_16 = arith.constant 8 : i32
    %c0_i32_17 = arith.constant 0 : i32
    %45 = arith.cmpi eq, %c8_i32_16, %c0_i32_17 : i32
    %c1_i32_18 = arith.constant 1 : i32
    %46 = arith.select %45, %c1_i32_18, %c8_i32_16 : i32
    %47 = vector.broadcast %46 : i32 to vector<16x8xi32>
    %48 = arith.remsi %44, %47 : vector<16x8xi32>
    %c0_i32_19 = arith.constant 0 : i32
    %49 = vector.broadcast %c0_i32_19 : i32 to vector<16x8xi32>
    %50 = arith.cmpi ne, %48, %49 : vector<16x8xi32>
    %c0_i32_20 = arith.constant 0 : i32
    %51 = vector.broadcast %c0_i32_20 : i32 to vector<16x8xi32>
    %52 = arith.cmpi slt, %48, %51 : vector<16x8xi32>
    %c0_i32_21 = arith.constant 0 : i32
    %53 = arith.cmpi slt, %46, %c0_i32_21 : i32
    %54 = vector.broadcast %53 : i1 to vector<16x8xi1>
    %55 = vector.broadcast %54 : vector<16x8xi1> to vector<16x8xi1>
    %56 = arith.xori %52, %55 : vector<16x8xi1>
    %57 = arith.andi %56, %50 : vector<16x8xi1>
    %58 = vector.broadcast %46 : i32 to vector<16x8xi32>
    %59 = arith.addi %48, %58 : vector<16x8xi32>
    %60 = arith.select %57, %59, %48 : vector<16x8xi1>, vector<16x8xi32>
    %61 = tpu.iota {dimensions = array<i32: 1>} : vector<16x8xi32>
    %62 = arith.cmpi sle, %61, %60 : vector<16x8xi32>
    %cst_22 = arith.constant 0.000000e+00 : f32
    %63 = vector.broadcast %cst_22 : f32 to vector<8x64xf32>
    %64 = vector.extract_strided_slice %43 {offsets = [0, 0], sizes = [8, 16], strides = [1, 1]} : vector<8x128xf32> to vector<8x16xf32>
    %65 = vector.extract_strided_slice %43 {offsets = [0, 16], sizes = [8, 16], strides = [1, 1]} : vector<8x128xf32> to vector<8x16xf32>
    %66 = tpu.concatenate %64, %65 in 0 : vector<8x16xf32>, vector<8x16xf32> -> vector<16x16xf32>
    %cst_23 = arith.constant 2.500000e-01 : f32
    %67 = vector.broadcast %cst_23 : f32 to vector<16x16xf32>
    %68 = arith.mulf %66, %67 : vector<16x16xf32>
    %69 = arith.truncf %68 : vector<16x16xf32> to vector<16x16xbf16>
    %70 = vector.extract_strided_slice %43 {offsets = [0, 64], sizes = [8, 16], strides = [1, 1]} : vector<8x128xf32> to vector<8x16xf32>
    %71 = arith.truncf %70 : vector<8x16xf32> to vector<8x16xbf16>
    %72 = vector.extract_strided_slice %43 {offsets = [0, 96], sizes = [8, 16], strides = [1, 1]} : vector<8x128xf32> to vector<8x16xf32>
    %73 = arith.truncf %72 : vector<8x16xf32> to vector<8x16xbf16>
    %cst_24 = arith.constant dense<0.000000e+00> : vector<16x8xf32>
    %74 = tpu.matmul %69, %71, %cst_24 {dimension_numbers = #tpu.dot_dimension_numbers<[1], [1], [0], [0], [0, 0, 1, 0], [], []>} : vector<16x16xbf16>, vector<8x16xbf16>, vector<16x8xf32> -> vector<16x8xf32>
    %cst_25 = arith.constant -1.000000e+30 : f32
    %75 = vector.broadcast %cst_25 : f32 to vector<16x8xf32>
    %76 = arith.select %62, %74, %75 : vector<16x8xi1>, vector<16x8xf32>
    %cst_26 = arith.constant dense<0xFF800000> : vector<16xf32>
    %77 = vector.multi_reduction <maximumf>, %76, %cst_26 [1] : vector<16x8xf32> to vector<16xf32>
    %78 = vector.shape_cast %77 : vector<16xf32> to vector<16x1xf32>
    %79 = vector.broadcast %78 : vector<16x1xf32> to vector<16x8xf32>
    %80 = arith.subf %76, %79 : vector<16x8xf32>
    %81 = math.exp %80 : vector<16x8xf32>
    %cst_27 = arith.constant dense<0.000000e+00> : vector<16xf32>
    %82 = vector.multi_reduction <add>, %81, %cst_27 [1] : vector<16x8xf32> to vector<16xf32>
    %83 = vector.shape_cast %82 : vector<16xf32> to vector<16x1xf32>
    %84 = tpu.reciprocal %83 : vector<16x1xf32> -> vector<16x1xf32>
    %85 = vector.broadcast %84 : vector<16x1xf32> to vector<16x8xf32>
    %86 = arith.mulf %81, %85 : vector<16x8xf32>
    %87 = arith.truncf %86 : vector<16x8xf32> to vector<16x8xbf16>
    %cst_28 = arith.constant dense<0.000000e+00> : vector<16x16xf32>
    %88 = tpu.matmul %87, %73, %cst_28 {dimension_numbers = #tpu.dot_dimension_numbers<[1], [0], [0], [1], [0, 0, 1, 1], [], []>} : vector<16x8xbf16>, vector<8x16xbf16>, vector<16x16xf32> -> vector<16x16xf32>
    %89 = vector.extract_strided_slice %88 {offsets = [0, 0], sizes = [8, 16], strides = [1, 1]} : vector<16x16xf32> to vector<8x16xf32>
    %90 = arith.truncf %89 : vector<8x16xf32> to vector<8x16xbf16>
    %c0_29 = arith.constant 0 : index
    %c0_30 = arith.constant 0 : index
    %91 = vector.load %arg6[%c0_29, %c0_30] : memref<64x64xbf16, #tpu.memory_space<vmem>>, vector<16x64xbf16>
    %cst_31 = arith.constant dense<0.000000e+00> : vector<8x64xf32>
    %92 = tpu.matmul %90, %91, %cst_31 {dimension_numbers = #tpu.dot_dimension_numbers<[1], [0], [0], [1], [0, 0, 1, 1], [], []>} : vector<8x16xbf16>, vector<16x64xbf16>, vector<8x64xf32> -> vector<8x64xf32>
    %93 = arith.addf %63, %92 : vector<8x64xf32>
    %94 = vector.extract_strided_slice %88 {offsets = [8, 0], sizes = [8, 16], strides = [1, 1]} : vector<16x16xf32> to vector<8x16xf32>
    %95 = arith.truncf %94 : vector<8x16xf32> to vector<8x16xbf16>
    %c16 = arith.constant 16 : index
    %c0_32 = arith.constant 0 : index
    %96 = vector.load %arg6[%c16, %c0_32] : memref<64x64xbf16, #tpu.memory_space<vmem>>, vector<16x64xbf16>
    %cst_33 = arith.constant dense<0.000000e+00> : vector<8x64xf32>
    %97 = tpu.matmul %95, %96, %cst_33 {dimension_numbers = #tpu.dot_dimension_numbers<[1], [0], [0], [1], [0, 0, 1, 1], [], []>} : vector<8x16xbf16>, vector<16x64xbf16>, vector<8x64xf32> -> vector<8x64xf32>
    %98 = arith.addf %93, %97 : vector<8x64xf32>
    %99 = vector.extract_strided_slice %43 {offsets = [0, 32], sizes = [8, 16], strides = [1, 1]} : vector<8x128xf32> to vector<8x16xf32>
    %100 = vector.extract_strided_slice %43 {offsets = [0, 48], sizes = [8, 16], strides = [1, 1]} : vector<8x128xf32> to vector<8x16xf32>
    %101 = tpu.concatenate %99, %100 in 0 : vector<8x16xf32>, vector<8x16xf32> -> vector<16x16xf32>
    %cst_34 = arith.constant 2.500000e-01 : f32
    %102 = vector.broadcast %cst_34 : f32 to vector<16x16xf32>
    %103 = arith.mulf %101, %102 : vector<16x16xf32>
    %104 = arith.truncf %103 : vector<16x16xf32> to vector<16x16xbf16>
    %105 = vector.extract_strided_slice %43 {offsets = [0, 80], sizes = [8, 16], strides = [1, 1]} : vector<8x128xf32> to vector<8x16xf32>
    %106 = arith.truncf %105 : vector<8x16xf32> to vector<8x16xbf16>
    %107 = vector.extract_strided_slice %43 {offsets = [0, 112], sizes = [8, 16], strides = [1, 1]} : vector<8x128xf32> to vector<8x16xf32>
    %108 = arith.truncf %107 : vector<8x16xf32> to vector<8x16xbf16>
    %cst_35 = arith.constant dense<0.000000e+00> : vector<16x8xf32>
    %109 = tpu.matmul %104, %106, %cst_35 {dimension_numbers = #tpu.dot_dimension_numbers<[1], [1], [0], [0], [0, 0, 1, 0], [], []>} : vector<16x16xbf16>, vector<8x16xbf16>, vector<16x8xf32> -> vector<16x8xf32>
    %cst_36 = arith.constant -1.000000e+30 : f32
    %110 = vector.broadcast %cst_36 : f32 to vector<16x8xf32>
    %111 = arith.select %62, %109, %110 : vector<16x8xi1>, vector<16x8xf32>
    %cst_37 = arith.constant dense<0xFF800000> : vector<16xf32>
    %112 = vector.multi_reduction <maximumf>, %111, %cst_37 [1] : vector<16x8xf32> to vector<16xf32>
    %113 = vector.shape_cast %112 : vector<16xf32> to vector<16x1xf32>
    %114 = vector.broadcast %113 : vector<16x1xf32> to vector<16x8xf32>
    %115 = arith.subf %111, %114 : vector<16x8xf32>
    %116 = math.exp %115 : vector<16x8xf32>
    %cst_38 = arith.constant dense<0.000000e+00> : vector<16xf32>
    %117 = vector.multi_reduction <add>, %116, %cst_38 [1] : vector<16x8xf32> to vector<16xf32>
    %118 = vector.shape_cast %117 : vector<16xf32> to vector<16x1xf32>
    %119 = tpu.reciprocal %118 : vector<16x1xf32> -> vector<16x1xf32>
    %120 = vector.broadcast %119 : vector<16x1xf32> to vector<16x8xf32>
    %121 = arith.mulf %116, %120 : vector<16x8xf32>
    %122 = arith.truncf %121 : vector<16x8xf32> to vector<16x8xbf16>
    %cst_39 = arith.constant dense<0.000000e+00> : vector<16x16xf32>
    %123 = tpu.matmul %122, %108, %cst_39 {dimension_numbers = #tpu.dot_dimension_numbers<[1], [0], [0], [1], [0, 0, 1, 1], [], []>} : vector<16x8xbf16>, vector<8x16xbf16>, vector<16x16xf32> -> vector<16x16xf32>
    %124 = vector.extract_strided_slice %123 {offsets = [0, 0], sizes = [8, 16], strides = [1, 1]} : vector<16x16xf32> to vector<8x16xf32>
    %125 = arith.truncf %124 : vector<8x16xf32> to vector<8x16xbf16>
    %c32 = arith.constant 32 : index
    %c0_40 = arith.constant 0 : index
    %126 = vector.load %arg6[%c32, %c0_40] : memref<64x64xbf16, #tpu.memory_space<vmem>>, vector<16x64xbf16>
    %cst_41 = arith.constant dense<0.000000e+00> : vector<8x64xf32>
    %127 = tpu.matmul %125, %126, %cst_41 {dimension_numbers = #tpu.dot_dimension_numbers<[1], [0], [0], [1], [0, 0, 1, 1], [], []>} : vector<8x16xbf16>, vector<16x64xbf16>, vector<8x64xf32> -> vector<8x64xf32>
    %128 = arith.addf %98, %127 : vector<8x64xf32>
    %129 = vector.extract_strided_slice %123 {offsets = [8, 0], sizes = [8, 16], strides = [1, 1]} : vector<16x16xf32> to vector<8x16xf32>
    %130 = arith.truncf %129 : vector<8x16xf32> to vector<8x16xbf16>
    %c48 = arith.constant 48 : index
    %c0_42 = arith.constant 0 : index
    %131 = vector.load %arg6[%c48, %c0_42] : memref<64x64xbf16, #tpu.memory_space<vmem>>, vector<16x64xbf16>
    %cst_43 = arith.constant dense<0.000000e+00> : vector<8x64xf32>
    %132 = tpu.matmul %130, %131, %cst_43 {dimension_numbers = #tpu.dot_dimension_numbers<[1], [0], [0], [1], [0, 0, 1, 1], [], []>} : vector<8x16xbf16>, vector<16x64xbf16>, vector<8x64xf32> -> vector<8x64xf32>
    %133 = arith.addf %128, %132 : vector<8x64xf32>
    %134 = arith.addf %133, %0 : vector<8x64xf32>
    %c0_44 = arith.constant 0 : index
    %c0_45 = arith.constant 0 : index
    %135 = vector.load %arg9[%c0_44, %c0_45] : memref<8x64xf32, #tpu.memory_space<vmem>>, vector<8x64xf32>
    tpu.vector_store %arg9[%c0_44, %c0_45], %134 {strides = array<i32>} : memref<8x64xf32, #tpu.memory_space<vmem>>, vector<8x64xf32>,
    %136 = arith.mulf %134, %134 : vector<8x64xf32>
    %cst_46 = arith.constant dense<0.000000e+00> : vector<8xf32>
    %137 = vector.multi_reduction <add>, %136, %cst_46 [1] : vector<8x64xf32> to vector<8xf32>
    %138 = vector.shape_cast %137 : vector<8xf32> to vector<8x1xf32>
    %cst_47 = arith.constant 6.400000e+01 : f32
    %139 = vector.broadcast %cst_47 : f32 to vector<8x1xf32>
    %140 = arith.divf %138, %139 : vector<8x1xf32>
    %cst_48 = arith.constant 9.99999997E-7 : f32
    %141 = vector.broadcast %cst_48 : f32 to vector<8x1xf32>
    %142 = arith.addf %140, %141 : vector<8x1xf32>
    %143 = math.rsqrt %142 : vector<8x1xf32>
    %144 = vector.broadcast %143 : vector<8x1xf32> to vector<8x64xf32>
    %145 = arith.mulf %134, %144 : vector<8x64xf32>
    %c0_49 = arith.constant 0 : index
    %c0_50 = arith.constant 0 : index
    %146 = vector.load %arg2[%c0_49, %c0_50] : memref<1x64xf32, #tpu.memory_space<vmem>>, vector<1x64xf32>
    %147 = vector.broadcast %146 : vector<1x64xf32> to vector<8x64xf32>
    %148 = arith.mulf %145, %147 : vector<8x64xf32>
    %149 = arith.truncf %148 : vector<8x64xf32> to vector<8x64xbf16>
    %c0_51 = arith.constant 0 : index
    %c0_52 = arith.constant 0 : index
    %150 = vector.load %arg8[%c0_51, %c0_52] : memref<8x64xbf16, #tpu.memory_space<vmem>>, vector<8x64xbf16>
    tpu.vector_store %arg8[%c0_51, %c0_52], %149 {strides = array<i32>} : memref<8x64xbf16, #tpu.memory_space<vmem>>, vector<8x64xbf16>,
    %c0_53 = arith.constant 0 : index
    %c0_54 = arith.constant 0 : index
    %151 = vector.load %arg7[%c0_53, %c0_54] : memref<64x4xbf16, #tpu.memory_space<vmem>>, vector<64x4xbf16>
    %cst_55 = arith.constant dense<0.000000e+00> : vector<8x4xf32>
    %152 = tpu.matmul %149, %151, %cst_55 {dimension_numbers = #tpu.dot_dimension_numbers<[1], [0], [0], [1], [0, 0, 1, 1], [], []>} : vector<8x64xbf16>, vector<64x4xbf16>, vector<8x4xf32> -> vector<8x4xf32>
    %c0_56 = arith.constant 0 : index
    %c0_57 = arith.constant 0 : index
    %153 = vector.load %arg10[%c0_56, %c0_57] : memref<8x4xf32, #tpu.memory_space<vmem>>, vector<8x4xf32>
    tpu.vector_store %arg10[%c0_56, %c0_57], %152 {strides = array<i32>} : memref<8x4xf32, #tpu.memory_space<vmem>>, vector<8x4xf32>,
    return
  }
}

</mosaic_0001>

<llo_original>
// kernel: tpu_custom_call.1
$region0: #{tpu_custom_call.1}
  #allocation0 [shape = 'u32[]', space=smem, size = 0x4, offset = 0x4, fixed_abs, tag = 'smem constant byte address 0x4 - core index']
  #allocation1 [shape = 'u32[144,128]{1,0:T(1,128)}', space=vmem, size = 0x12000, scoped, tag = 'internal scratch']
  %s0 = inlined_call_operand.vmem [shape: f32[8,64], index: 0, kind: input, shape index: {}]
  %s1 = inlined_call_operand.vmem [shape: f32[1,64], index: 1, kind: input, shape index: {}]
  %s2 = inlined_call_operand.vmem [shape: f32[1,64], index: 2, kind: input, shape index: {}]
  %s3 = inlined_call_operand.vmem [shape: f32[8,128], index: 3, kind: input, shape index: {}]
  %s4 = inlined_call_operand.hbm [shape: f32[8,128], index: 4, kind: input, shape index: {}]
  %s5 = inlined_call_operand.vmem [shape: bf16[64,128], index: 5, kind: input, shape index: {}]
  %s6 = inlined_call_operand.hbm [shape: bf16[64,64], index: 6, kind: input, shape index: {}]
  %s7 = inlined_call_operand.vmem [shape: bf16[64,4], index: 7, kind: input, shape index: {}]
  %s8 = inlined_call_operand.hbm [shape: bf16[8,64], index: 8, kind: output, shape index: {0}]
  %s9 = inlined_call_operand.hbm [shape: f32[8,64], index: 9, kind: output, shape index: {1}]
  %s10 = inlined_call_operand.vmem [shape: f32[8,4], index: 10, kind: output, shape index: {2}]
  %11 = xla_tuple %s8, %s9, %s10
  %s12 = sld [smem:[#allocation0]]
  $region66: #{tpu_custom_call.1} parent=0
    _
  %s14 = ssub.s32 1, %s12
  %s15 = scalar_select 0, %s14, %s12
  $region1: #{tpu_custom_call.1} parent=0
    #allocation2 [shape = 'u8[4096]{0}', space=vmem, size = 0x1000, scoped, tag = 'input window, operand 4, single buffered']
    #allocation3 [shape = 's32[1]{0}', space=sflag, size = 0x4, scoped, tag = 'scoped memory for tpu_custom_call.1']
    #allocation4 [shape = 's32[1]{0}', space=sflag, size = 0x4, scoped, tag = 'scoped memory for tpu_custom_call.1']
    #allocation5 [shape = 'u8[16384]{0}', space=vmem, size = 0x4000, scoped, tag = 'input window, operand 6, single buffered']
    #allocation6 [shape = 's32[1]{0}', space=sflag, size = 0x4, scoped, tag = 'scoped memory for tpu_custom_call.1']
    #allocation7 [shape = 'u8[2048]{0}', space=vmem, size = 0x800, scoped, tag = 'output window, operand 0, single buffered']
    #allocation8 [shape = 'u8[4096]{0}', space=vmem, size = 0x1000, scoped, tag = 'output window, operand 1, single buffered']
    #allocation9 [shape = 's32[1]{0}', space=sflag, size = 0x4, scoped, tag = 'scoped memory for tpu_custom_call.1']
    %16 = vsyncpa [#allocation3], 0
    %17 = vsyncpa [#allocation6], 0
    %18 = vsyncpa [#allocation4], 0
    %19 = vsyncpa [#allocation9], 0
    // Predicated region
    $region2: #{tpu_custom_call.1} parent=1 // pred_check
      _
    $region3: #{tpu_custom_call.1} parent=1 // pred_check_branch
      %21 = sbr.rel (0) target = $region5
    $region4: #{tpu_custom_call.1} parent=1 // pred_region
      _
    $region5: #{tpu_custom_call.1} parent=1 // pred_fallthru
      _
    // Predicated region
    $region6: #{tpu_custom_call.1} parent=1 // pred_check
      _
    $region7: #{tpu_custom_call.1} parent=1 // pred_check_branch
      %23 = sbr.rel (0) target = $region9
    $region8: #{tpu_custom_call.1} parent=1 // pred_region
      _
    $region9: #{tpu_custom_call.1} parent=1 // pred_fallthru
      _
    // Predicated region
    $region10: #{tpu_custom_call.1} parent=1 // pred_check
      _
    $region11: #{tpu_custom_call.1} parent=1 // pred_check_branch
      %25 = sbr.rel (0) target = $region13
    $region12: #{tpu_custom_call.1} parent=1 // pred_region
      _
    $region13: #{tpu_custom_call.1} parent=1 // pred_fallthru
      _
    // Predicated region
    $region14: #{tpu_custom_call.1} parent=1 // pred_check
      _
    $region15: #{tpu_custom_call.1} parent=1 // pred_check_branch
      %27 = sbr.rel (0) target = $region17
    $region16: #{tpu_custom_call.1} parent=1 // pred_region
      _
    $region17: #{tpu_custom_call.1} parent=1 // pred_fallthru
      _
    // Predicated region
    $region18: #{tpu_custom_call.1} parent=1 // pred_check
      _
    $region19: #{tpu_custom_call.1} parent=1 // pred_check_branch
      %29 = sbr.rel (0) target = $region21
    $region20: #{tpu_custom_call.1} parent=1 // pred_region
      %s31 = ssub.s32 128, 128
      %32 = vsyncadd [#allocation3], %s31
      %s34 = sshll.u32 [#allocation2], 4
      %s35 = int_to_ptr.vmem [resolvable:$true] %s34
      %37 = dma.hbm_to_vmem [thread:$0]  %s4, 128, %s35, [#allocation3]
    $region21: #{tpu_custom_call.1} parent=1 // pred_fallthru
      _
    // Predicated region
    $region22: #{tpu_custom_call.1} parent=1 // pred_check
      _
    $region23: #{tpu_custom_call.1} parent=1 // pred_check_branch
      %39 = sbr.rel (0) target = $region25
    $region24: #{tpu_custom_call.1} parent=1 // pred_region
      _
    $region25: #{tpu_custom_call.1} parent=1 // pred_fallthru
      _
    // Predicated region
    $region26: #{tpu_custom_call.1} parent=1 // pred_check
      _
    $region27: #{tpu_custom_call.1} parent=1 // pred_check_branch
      %41 = sbr.rel (0) target = $region29
    $region28: #{tpu_custom_call.1} parent=1 // pred_region
      %s43 = ssub.s32 512, 512
      %44 = vsyncadd [#allocation6], %s43
      %s45 = sshll.u32 [#allocation5], 4
      %s46 = int_to_ptr.vmem [resolvable:$true] %s45
      %51 = dma.hbm_to_vmem [thread:$0]  %s6, 512, %s46, [#allocation6], 64, 64, 4
    $region29: #{tpu_custom_call.1} parent=1 // pred_fallthru
      _
    // Predicated region
    $region30: #{tpu_custom_call.1} parent=1 // pred_check
      _
    $region31: #{tpu_custom_call.1} parent=1 // pred_check_branch
      %53 = sbr.rel (0) target = $region33
    $region32: #{tpu_custom_call.1} parent=1 // pred_region
      _
    $region33: #{tpu_custom_call.1} parent=1 // pred_fallthru
      _
    // Predicated region
    $region34: #{tpu_custom_call.1} parent=1 // pred_check
      _
    $region35: #{tpu_custom_call.1} parent=1 // pred_check_branch
      %55 = sbr.rel (0) target = $region37
    $region36: #{tpu_custom_call.1} parent=1 // pred_region
      %56 = dma.done [#allocation3], 128
    $region37: #{tpu_custom_call.1} parent=1 // pred_fallthru
      _
    // Predicated region
    $region38: #{tpu_custom_call.1} parent=1 // pred_check
      _
    $region39: #{tpu_custom_call.1} parent=1 // pred_check_branch
      %58 = sbr.rel (0) target = $region41
    $region40: #{tpu_custom_call.1} parent=1 // pred_region
      %59 = dma.done [#allocation6], 512
    $region41: #{tpu_custom_call.1} parent=1 // pred_fallthru
      _
    %v61 = vld [vmem:[%s0] sm:$0xff]
    %v62 = vmul.f32 %v61, %v61
    %vm63 = vcmask 523264
    %v64 = vsel %vm63, %v62, 0.0
    %65 = vadd.xlane.f32.xlu0 %v64
    %v66 = vpop.xlane.xlu0 %65
    %v67 = vrcp.pop 64.0
    %v68 = vmul.f32 %v66, %v67
    %v69 = vadd.f32 %v68, 1e-06
    %v70 = vrsqrt.pop %v69
    %v71 = vmul.f32 %v61, %v70
    %v72 = vld [vmem:[%s1] sm:$0x1]
    %v74 = vlaneseq
    %v75 = vshrl.u32 %v74, 7
    %v76 = vsub.s32 0, %v75
    %v77 = vrot.slane %v72, %v76
    %v79 = vmul.f32 %v71, %v77
    %v80 = vpack.c.bf16 %v79, %v79
    %v81 = vld [vmem:[%s5] sm:$0xf]
    %v82 = vld [vmem:[%s5 + $0x4] sm:$0xf]
    %v83 = vld [vmem:[%s5 + $0x8] sm:$0xf]
    %v84 = vld [vmem:[%s5 + $0xc] sm:$0xf]
    %v85 = vld [vmem:[%s5 + $0x10] sm:$0xf]
    %v86 = vld [vmem:[%s5 + $0x14] sm:$0xf]
    %v87 = vld [vmem:[%s5 + $0x18] sm:$0xf]
    %v88 = vld [vmem:[%s5 + $0x1c] sm:$0xf]
    %v97 = vunpack.c.l.b16 %v81
    %v98 = vunpack.c.l.b16 %v82
    %v99 = vunpack.c.l.b16 %v83
    %v100 = vunpack.c.l.b16 %v84
    %v101 = vunpack.c.l.b16 %v85
    %v102 = vunpack.c.l.b16 %v86
    %v103 = vunpack.c.l.b16 %v87
    %v104 = vunpack.c.l.b16 %v88
    %v105 = vpack.c.b16 %v98, %v97
    %v106 = vpack.c.b16 %v100, %v99
    %v107 = vpack.c.b16 %v102, %v101
    %v108 = vpack.c.b16 %v104, %v103
    %v114 = vsel %vm63, %v80, 0
    %116 = vmatprep.subr.bf16.mxu0 0
    %117 = vmatpush1.bf16.msra.mxu0 %v105
    %118 = vmatprep.subr.bf16.mxu0 0
    %119 = vmatpush1.bf16.msra.mxu0 %v106
    %120 = vmatprep.subr.bf16.mxu0 0
    %121 = vmatpush1.bf16.msra.mxu0 %v107
    %122 = vmatprep.subr.bf16.mxu0 0
    %123 = vmatpush1.bf16.msra.mxu0 %v108
    %124 = vmatprep.subr.bf16.mxu0 0
    %125 = vmatpush1.bf16.msra.mxu0 0
    %126 = vmatprep.subr.bf16.mxu0 0
    %127 = vmatpush1.bf16.msra.mxu0 0
    %128 = vmatprep.subr.bf16.mxu0 0
    %129 = vmatpush1.bf16.msra.mxu0 0
    %130 = vmatprep.subr.bf16.mxu0 0
    %131 = vmatpush1.bf16.msra.mxu0 0
    %132 = vmatprep.subr.bf16.mxu0 0
    %133 = vmatpush1.bf16.msra.mxu0 0
    %134 = vmatprep.subr.bf16.mxu0 0
    %135 = vmatpush1.bf16.msra.mxu0 0
    %136 = vmatprep.subr.bf16.mxu0 0
    %137 = vmatpush1.bf16.msra.mxu0 0
    %138 = vmatprep.subr.bf16.mxu0 0
    %139 = vmatpush1.bf16.msra.mxu0 0
    %140 = vmatprep.subr.bf16.mxu0 0
    %141 = vmatpush1.bf16.msra.mxu0 0
    %142 = vmatprep.subr.bf16.mxu0 0
    %143 = vmatpush1.bf16.msra.mxu0 0
    %144 = vmatprep.subr.bf16.mxu0 0
    %145 = vmatpush1.bf16.msra.mxu0 0
    %146 = vmatprep.subr.bf16.mxu0 0
    %147 = vmatpush1.bf16.msra.mxu0 0
    %148 = vmatprep.mubr.bf16.mxu0 0
    %149 = vmatmul.mubr.bf16.gmra.mrb[0].mxu0 %v114
    %v150 = vpop.f32.mrb[0].mxu0
    %v151 = vadd.f32 0.0, %v150
    %v152 = vpop.f32.mrb[0].mxu0
    %v153 = vpop.f32.mrb[0].mxu0
    %v154 = vpop.f32.mrb[0].mxu0
    %155 = vdwg.mxu0
    %v156 = vlaneseq
    %v157 = vand.u32 %v156, 127
    %vm158 = vcmp.lt.s32.totalorder %v157, 0
    %v159 = vsub.s32 0, %v157
    %v160 = vsel %vm158, %v159, %v157
    %v161 = vshrl.u32 %v160, 4
    %v162 = vand.u32 %v160, 15
    %v163 = vsub.s32 0, %v162
    %v164 = vsel %vm158, %v163, %v162
    %vm165 = vcmp.ne.s32.totalorder %v164, 0
    %vm166 = vcmp.lt.s32.totalorder %v164, 0
    %vm167 = vmand %vm166, %vm165
    %v168 = vadd.s32 %v164, 16
    %v169 = vsel %vm167, %v168, %v164
    %vm170 = vcmp.lt.s32.totalorder %v169, 8
    %171 = vrot.lane.b32.xlu0 %v151, 120
    %v172 = vpop.permute.xlu0 %171
    %173 = vrot.lane.b32.xlu0 %v151, 8
    %v174 = vpop.permute.xlu0 %173
    %v175 = vsel %vm170, %v172, %v174
    %v176 = vld [vmem:[%s3] sm:$0xff]
    %v177 = vmul.f32 %v151, %v176
    %v178 = vld [vmem:[#allocation2] sm:$0xff]
    %v179 = vmul.f32 %v175, %v178
    %v180 = vadd.f32 %v177, %v179
    %v181 = vlaneseq
    %v182 = vshrl.u32 %v181, 7
    %v183 = vadd.s32 %v182, 8
    %vm184 = vcmp.lt.s32.totalorder %v182, 0
    %v185 = vsub.s32 0, %v182
    %v186 = vsel %vm184, %v185, %v182
    %v187 = vshrl.u32 %v186, 3
    %v188 = vand.u32 %v186, 7
    %v189 = vsub.s32 0, %v188
    %v190 = vsel %vm184, %v189, %v188
    %vm191 = vcmp.lt.s32.totalorder %v183, 0
    %v192 = vsub.s32 0, %v183
    %v193 = vsel %vm191, %v192, %v183
    %v194 = vshrl.u32 %v193, 3
    %v195 = vand.u32 %v193, 7
    %v196 = vsub.s32 0, %v195
    %v197 = vsel %vm191, %v196, %v195
    %vm198 = vcmp.ne.s32.totalorder %v190, 0
    %vm199 = vcmp.ne.s32.totalorder %v197, 0
    %vm200 = vcmp.lt.s32.totalorder %v190, 0
    %vm201 = vcmp.lt.s32.totalorder %v197, 0
    %vm202 = vmand %vm200, %vm198
    %vm203 = vmand %vm201, %vm199
    %v204 = vadd.s32 %v190, 8
    %v205 = vadd.s32 %v197, 8
    %v206 = vsel %vm202, %v204, %v190
    %v207 = vsel %vm203, %v205, %v197
    %vm208 = vcmp.le.s32.totalorder %v157, %v206
    %vm209 = vcmp.le.s32.totalorder %v157, %v207
    %211 = vrot.lane.b32.xlu0 %v180, 112
    %v212 = vpop.permute.xlu0 %211
    %v214 = vmul.f32 %v180, 0.25
    %v215 = vmul.f32 %v212, 0.25
    %v216 = vpack.c.bf16 %v215, %v214
    %v217 = vpack.c.bf16 %v180, %v180
    %219 = vrot.lane.b32.xlu0 %v217, 64
    %v220 = vpop.permute.xlu0 %219
    %vm221 = vcmask 130048
    %v223 = vsel %vm221, %v216, 0
    %v226 = vsel %vm221, %v220, 0
    %228 = vmatprep.subr.bf16.mxu0 0
    %229 = vmatpush1.bf16.xpose.msra.mxu0 %v226
    %230 = vmatprep.subr.bf16.mxu0 0
    %231 = vmatpush1.bf16.xpose.msra.mxu0 0
    %232 = vmatprep.subr.bf16.mxu0 0
    %233 = vmatpush1.bf16.xpose.msra.mxu0 0
    %234 = vmatprep.subr.bf16.mxu0 0
    %235 = vmatpush1.bf16.xpose.msra.mxu0 0
    %236 = vmatprep.subr.bf16.mxu0 0
    %237 = vmatpush1.bf16.xpose.msra.mxu0 0
    %238 = vmatprep.subr.bf16.mxu0 0
    %239 = vmatpush1.bf16.xpose.msra.mxu0 0
    %240 = vmatprep.subr.bf16.mxu0 0
    %241 = vmatpush1.bf16.xpose.msra.mxu0 0
    %242 = vmatprep.subr.bf16.mxu0 0
    %243 = vmatpush1.bf16.xpose.msra.mxu0 0
    %244 = vmatprep.subr.bf16.mxu0 0
    %245 = vmatpush1.bf16.xpose.msra.mxu0 0
    %246 = vmatprep.subr.bf16.mxu0 0
    %247 = vmatpush1.bf16.xpose.msra.mxu0 0
    %248 = vmatprep.subr.bf16.mxu0 0
    %249 = vmatpush1.bf16.xpose.msra.mxu0 0
    %250 = vmatprep.subr.bf16.mxu0 0
    %251 = vmatpush1.bf16.xpose.msra.mxu0 0
    %252 = vmatprep.subr.bf16.mxu0 0
    %253 = vmatpush1.bf16.xpose.msra.mxu0 0
    %254 = vmatprep.subr.bf16.mxu0 0
    %255 = vmatpush1.bf16.xpose.msra.mxu0 0
    %256 = vmatprep.subr.bf16.mxu0 0
    %257 = vmatpush1.bf16.xpose.msra.mxu0 0
    %258 = vmatprep.subr.bf16.mxu0 0
    %259 = vmatpush1.bf16.xpose.msra.mxu0 0
    %260 = vmatprep.mubr.bf16.mxu0 0
    %261 = vmatmul.mubr.bf16.gmra.mrb[0].mxu0 %v223
    %v262 = vpop.f32.mrb[0].mxu0
    %v263 = vadd.f32 0.0, %v262
    %v264 = vpop.f32.mrb[0].mxu0
    %v265 = vpop.f32.mrb[0].mxu0
    %v266 = vadd.f32 0.0, %v265
    %v267 = vpop.f32.mrb[0].mxu0
    %268 = vdwg.mxu0
    %v269 = vsel %vm208, %v263, -1e+30
    %v270 = vsel %vm209, %v266, -1e+30
    %vm271 = vcmask 64512
    %v272 = vsel %vm271, %v269, -inf
    %273 = vmax.xlane.f32.xlu0 %v272
    %v274 = vpop.xlane.xlu0 %273
    %v275 = vsel %vm271, %v270, -inf
    %276 = vmax.xlane.f32.xlu0 %v275
    %v277 = vpop.xlane.xlu0 %276
    %v278 = vsub.f32 %v269, %v274
    %v279 = vsub.f32 %v270, %v277
    %v280 = vmul.f32 %v278, 1.442695
    %v281 = vpow.pop %v280
    %v282 = vmul.f32 %v279, 1.442695
    %v283 = vpow.pop %v282
    %v284 = vsel %vm271, %v281, 0.0
    %285 = vadd.xlane.f32.xlu0 %v284
    %v286 = vpop.xlane.xlu0 %285
    %v287 = vsel %vm271, %v283, 0.0
    %288 = vadd.xlane.f32.xlu0 %v287
    %v289 = vpop.xlane.xlu0 %288
    %v290 = vrcp.pop %v286
    %v291 = vrcp.pop %v289
    %v292 = vmul.f32 %v281, %v290
    %v293 = vmul.f32 %v283, %v291
    %v294 = vpack.c.bf16 %v293, %v292
    %295 = vrot.lane.b32.xlu0 %v217, 32
    %v296 = vpop.permute.xlu0 %295
    %v298 = vsel %vm271, %v294, 0
    %vm300 = vcmask 1043456
    %v302 = vsel %vm300, %v296, 0
    %304 = vmatprep.subr.bf16.mxu0 0
    %305 = vmatpush1.bf16.msra.mxu0 %v302
    %306 = vmatprep.subr.bf16.mxu0 0
    %307 = vmatpush1.bf16.msra.mxu0 0
    %308 = vmatprep.subr.bf16.mxu0 0
    %309 = vmatpush1.bf16.msra.mxu0 0
    %310 = vmatprep.subr.bf16.mxu0 0
    %311 = vmatpush1.bf16.msra.mxu0 0
    %312 = vmatprep.subr.bf16.mxu0 0
    %313 = vmatpush1.bf16.msra.mxu0 0
    %314 = vmatprep.subr.bf16.mxu0 0
    %315 = vmatpush1.bf16.msra.mxu0 0
    %316 = vmatprep.subr.bf16.mxu0 0
    %317 = vmatpush1.bf16.msra.mxu0 0
    %318 = vmatprep.subr.bf16.mxu0 0
    %319 = vmatpush1.bf16.msra.mxu0 0
    %320 = vmatprep.subr.bf16.mxu0 0
    %321 = vmatpush1.bf16.msra.mxu0 0
    %322 = vmatprep.subr.bf16.mxu0 0
    %323 = vmatpush1.bf16.msra.mxu0 0
    %324 = vmatprep.subr.bf16.mxu0 0
    %325 = vmatpush1.bf16.msra.mxu0 0
    %326 = vmatprep.subr.bf16.mxu0 0
    %327 = vmatpush1.bf16.msra.mxu0 0
    %328 = vmatprep.subr.bf16.mxu0 0
    %329 = vmatpush1.bf16.msra.mxu0 0
    %330 = vmatprep.subr.bf16.mxu0 0
    %331 = vmatpush1.bf16.msra.mxu0 0
    %332 = vmatprep.subr.bf16.mxu0 0
    %333 = vmatpush1.bf16.msra.mxu0 0
    %334 = vmatprep.subr.bf16.mxu0 0
    %335 = vmatpush1.bf16.msra.mxu0 0
    %336 = vmatprep.mubr.bf16.mxu0 0
    %337 = vmatmul.mubr.bf16.gmra.mrb[0].mxu0 %v298
    %v338 = vpop.f32.mrb[0].mxu0
    %v339 = vadd.f32 0.0, %v338
    %v340 = vpop.f32.mrb[0].mxu0
    %v341 = vpop.f32.mrb[0].mxu0
    %v342 = vadd.f32 0.0, %v341
    %v343 = vpop.f32.mrb[0].mxu0
    %344 = vdwg.mxu0
    %v345 = vpack.c.bf16 %v339, %v339
    %v346 = vld [vmem:[#allocation5] sm:$0xf]
    %v347 = vld [vmem:[#allocation5 + $0x4] sm:$0xf]
    %v348 = vpack.c.bf16 %v342, %v342
    %v349 = vld [vmem:[#allocation5 + $0x8] sm:$0xf]
    %v350 = vld [vmem:[#allocation5 + $0xc] sm:$0xf]
    %v353 = vunpack.c.l.b16 %v349
    %v354 = vunpack.c.l.b16 %v350
    %v355 = vpack.c.b16 %v354, %v353
    %v358 = vsel %vm221, %v348, 0
    %360 = vmatprep.subr.bf16.mxu0 0
    %361 = vmatpush1.bf16.msra.mxu0 %v355
    %362 = vmatprep.subr.bf16.mxu0 0
    %363 = vmatpush1.bf16.msra.mxu0 0
    %364 = vmatprep.subr.bf16.mxu0 0
    %365 = vmatpush1.bf16.msra.mxu0 0
    %366 = vmatprep.subr.bf16.mxu0 0
    %367 = vmatpush1.bf16.msra.mxu0 0
    %368 = vmatprep.subr.bf16.mxu0 0
    %369 = vmatpush1.bf16.msra.mxu0 0
    %370 = vmatprep.subr.bf16.mxu0 0
    %371 = vmatpush1.bf16.msra.mxu0 0
    %372 = vmatprep.subr.bf16.mxu0 0
    %373 = vmatpush1.bf16.msra.mxu0 0
    %374 = vmatprep.subr.bf16.mxu0 0
    %375 = vmatpush1.bf16.msra.mxu0 0
    %376 = vmatprep.subr.bf16.mxu0 0
    %377 = vmatpush1.bf16.msra.mxu0 0
    %378 = vmatprep.subr.bf16.mxu0 0
    %379 = vmatpush1.bf16.msra.mxu0 0
    %380 = vmatprep.subr.bf16.mxu0 0
    %381 = vmatpush1.bf16.msra.mxu0 0
    %382 = vmatprep.subr.bf16.mxu0 0
    %383 = vmatpush1.bf16.msra.mxu0 0
    %384 = vmatprep.subr.bf16.mxu0 0
    %385 = vmatpush1.bf16.msra.mxu0 0
    %386 = vmatprep.subr.bf16.mxu0 0
    %387 = vmatpush1.bf16.msra.mxu0 0
    %388 = vmatprep.subr.bf16.mxu0 0
    %389 = vmatpush1.bf16.msra.mxu0 0
    %390 = vmatprep.subr.bf16.mxu0 0
    %391 = vmatpush1.bf16.msra.mxu0 0
    %392 = vmatprep.mubr.bf16.mxu0 0
    %393 = vmatmul.mubr.bf16.gmra.mrb[0].mxu0 %v358
    %v394 = vpop.f32.mrb[0].mxu0
    %v395 = vadd.f32 0.0, %v394
    %v396 = vpop.f32.mrb[0].mxu0
    %v397 = vpop.f32.mrb[0].mxu0
    %v398 = vpop.f32.mrb[0].mxu0
    %399 = vdwg.mxu0
    %v402 = vunpack.c.l.b16 %v346
    %v403 = vunpack.c.l.b16 %v347
    %v404 = vpack.c.b16 %v403, %v402
    %v407 = vsel %vm221, %v345, 0
    %409 = vmatprep.subr.bf16.mxu0 0
    %410 = vmatpush1.bf16.msra.mxu0 %v404
    %411 = vmatprep.subr.bf16.mxu0 0
    %412 = vmatpush1.bf16.msra.mxu0 0
    %413 = vmatprep.subr.bf16.mxu0 0
    %414 = vmatpush1.bf16.msra.mxu0 0
    %415 = vmatprep.subr.bf16.mxu0 0
    %416 = vmatpush1.bf16.msra.mxu0 0
    %417 = vmatprep.subr.bf16.mxu0 0
    %418 = vmatpush1.bf16.msra.mxu0 0
    %419 = vmatprep.subr.bf16.mxu0 0
    %420 = vmatpush1.bf16.msra.mxu0 0
    %421 = vmatprep.subr.bf16.mxu0 0
    %422 = vmatpush1.bf16.msra.mxu0 0
    %423 = vmatprep.subr.bf16.mxu0 0
    %424 = vmatpush1.bf16.msra.mxu0 0
    %425 = vmatprep.subr.bf16.mxu0 0
    %426 = vmatpush1.bf16.msra.mxu0 0
    %427 = vmatprep.subr.bf16.mxu0 0
    %428 = vmatpush1.bf16.msra.mxu0 0
    %429 = vmatprep.subr.bf16.mxu0 0
    %430 = vmatpush1.bf16.msra.mxu0 0
    %431 = vmatprep.subr.bf16.mxu0 0
    %432 = vmatpush1.bf16.msra.mxu0 0
    %433 = vmatprep.subr.bf16.mxu0 0
    %434 = vmatpush1.bf16.msra.mxu0 0
    %435 = vmatprep.subr.bf16.mxu0 0
    %436 = vmatpush1.bf16.msra.mxu0 0
    %437 = vmatprep.subr.bf16.mxu0 0
    %438 = vmatpush1.bf16.msra.mxu0 0
    %439 = vmatprep.subr.bf16.mxu0 0
    %440 = vmatpush1.bf16.msra.mxu0 0
    %441 = vmatprep.mubr.bf16.mxu0 0
    %442 = vmatmul.mubr.bf16.gmra.mrb[0].mxu0 %v407
    %v443 = vpop.f32.mrb[0].mxu0
    %v444 = vadd.f32 %v395, %v443
    %v445 = vpop.f32.mrb[0].mxu0
    %v446 = vpop.f32.mrb[0].mxu0
    %v447 = vpop.f32.mrb[0].mxu0
    %448 = vdwg.mxu0
    %450 = vrot.lane.b32.xlu0 %v216, 96
    %v451 = vpop.permute.xlu0 %450
    %452 = vrot.lane.b32.xlu0 %v217, 48
    %v453 = vpop.permute.xlu0 %452
    %v455 = vsel %vm221, %v451, 0
    %v458 = vsel %vm221, %v453, 0
    %460 = vmatprep.subr.bf16.mxu0 0
    %461 = vmatpush1.bf16.xpose.msra.mxu0 %v458
    %462 = vmatprep.subr.bf16.mxu0 0
    %463 = vmatpush1.bf16.xpose.msra.mxu0 0
    %464 = vmatprep.subr.bf16.mxu0 0
    %465 = vmatpush1.bf16.xpose.msra.mxu0 0
    %466 = vmatprep.subr.bf16.mxu0 0
    %467 = vmatpush1.bf16.xpose.msra.mxu0 0
    %468 = vmatprep.subr.bf16.mxu0 0
    %469 = vmatpush1.bf16.xpose.msra.mxu0 0
    %470 = vmatprep.subr.bf16.mxu0 0
    %471 = vmatpush1.bf16.xpose.msra.mxu0 0
    %472 = vmatprep.subr.bf16.mxu0 0
    %473 = vmatpush1.bf16.xpose.msra.mxu0 0
    %474 = vmatprep.subr.bf16.mxu0 0
    %475 = vmatpush1.bf16.xpose.msra.mxu0 0
    %476 = vmatprep.subr.bf16.mxu0 0
    %477 = vmatpush1.bf16.xpose.msra.mxu0 0
    %478 = vmatprep.subr.bf16.mxu0 0
    %479 = vmatpush1.bf16.xpose.msra.mxu0 0
    %480 = vmatprep.subr.bf16.mxu0 0
    %481 = vmatpush1.bf16.xpose.msra.mxu0 0
    %482 = vmatprep.subr.bf16.mxu0 0
    %483 = vmatpush1.bf16.xpose.msra.mxu0 0
    %484 = vmatprep.subr.bf16.mxu0 0
    %485 = vmatpush1.bf16.xpose.msra.mxu0 0
    %486 = vmatprep.subr.bf16.mxu0 0
    %487 = vmatpush1.bf16.xpose.msra.mxu0 0
    %488 = vmatprep.subr.bf16.mxu0 0
    %489 = vmatpush1.bf16.xpose.msra.mxu0 0
    %490 = vmatprep.subr.bf16.mxu0 0
    %491 = vmatpush1.bf16.xpose.msra.mxu0 0
    %492 = vmatprep.mubr.bf16.mxu0 0
    %493 = vmatmul.mubr.bf16.gmra.mrb[0].mxu0 %v455
    %v494 = vpop.f32.mrb[0].mxu0
    %v495 = vadd.f32 0.0, %v494
    %v496 = vpop.f32.mrb[0].mxu0
    %v497 = vpop.f32.mrb[0].mxu0
    %v498 = vadd.f32 0.0, %v497
    %v499 = vpop.f32.mrb[0].mxu0
    %500 = vdwg.mxu0
    %v501 = vsel %vm208, %v495, -1e+30
    %v502 = vsel %vm209, %v498, -1e+30
    %v503 = vsel %vm271, %v501, -inf
    %504 = vmax.xlane.f32.xlu0 %v503
    %v505 = vpop.xlane.xlu0 %504
    %v506 = vsel %vm271, %v502, -inf
    %507 = vmax.xlane.f32.xlu0 %v506
    %v508 = vpop.xlane.xlu0 %507
    %v509 = vsub.f32 %v501, %v505
    %v510 = vsub.f32 %v502, %v508
    %v511 = vmul.f32 %v509, 1.442695
    %v512 = vpow.pop %v511
    %v513 = vmul.f32 %v510, 1.442695
    %v514 = vpow.pop %v513
    %v515 = vsel %vm271, %v512, 0.0
    %516 = vadd.xlane.f32.xlu0 %v515
    %v517 = vpop.xlane.xlu0 %516
    %v518 = vsel %vm271, %v514, 0.0
    %519 = vadd.xlane.f32.xlu0 %v518
    %v520 = vpop.xlane.xlu0 %519
    %v521 = vrcp.pop %v517
    %v522 = vrcp.pop %v520
    %v523 = vmul.f32 %v512, %v521
    %v524 = vmul.f32 %v514, %v522
    %v525 = vpack.c.bf16 %v524, %v523
    %526 = vrot.lane.b32.xlu0 %v217, 16
    %v527 = vpop.permute.xlu0 %526
    %v529 = vsel %vm271, %v525, 0
    %v532 = vsel %vm300, %v527, 0
    %534 = vmatprep.subr.bf16.mxu0 0
    %535 = vmatpush1.bf16.msra.mxu0 %v532
    %536 = vmatprep.subr.bf16.mxu0 0
    %537 = vmatpush1.bf16.msra.mxu0 0
    %538 = vmatprep.subr.bf16.mxu0 0
    %539 = vmatpush1.bf16.msra.mxu0 0
    %540 = vmatprep.subr.bf16.mxu0 0
    %541 = vmatpush1.bf16.msra.mxu0 0
    %542 = vmatprep.subr.bf16.mxu0 0
    %543 = vmatpush1.bf16.msra.mxu0 0
    %544 = vmatprep.subr.bf16.mxu0 0
    %545 = vmatpush1.bf16.msra.mxu0 0
    %546 = vmatprep.subr.bf16.mxu0 0
    %547 = vmatpush1.bf16.msra.mxu0 0
    %548 = vmatprep.subr.bf16.mxu0 0
    %549 = vmatpush1.bf16.msra.mxu0 0
    %550 = vmatprep.subr.bf16.mxu0 0
    %551 = vmatpush1.bf16.msra.mxu0 0
    %552 = vmatprep.subr.bf16.mxu0 0
    %553 = vmatpush1.bf16.msra.mxu0 0
    %554 = vmatprep.subr.bf16.mxu0 0
    %555 = vmatpush1.bf16.msra.mxu0 0
    %556 = vmatprep.subr.bf16.mxu0 0
    %557 = vmatpush1.bf16.msra.mxu0 0
    %558 = vmatprep.subr.bf16.mxu0 0
    %559 = vmatpush1.bf16.msra.mxu0 0
    %560 = vmatprep.subr.bf16.mxu0 0
    %561 = vmatpush1.bf16.msra.mxu0 0
    %562 = vmatprep.subr.bf16.mxu0 0
    %563 = vmatpush1.bf16.msra.mxu0 0
    %564 = vmatprep.subr.bf16.mxu0 0
    %565 = vmatpush1.bf16.msra.mxu0 0
    %566 = vmatprep.mubr.bf16.mxu0 0
    %567 = vmatmul.mubr.bf16.gmra.mrb[0].mxu0 %v529
    %v568 = vpop.f32.mrb[0].mxu0
    %v569 = vadd.f32 0.0, %v568
    %v570 = vpop.f32.mrb[0].mxu0
    %v571 = vpop.f32.mrb[0].mxu0
    %v572 = vadd.f32 0.0, %v571
    %v573 = vpop.f32.mrb[0].mxu0
    %574 = vdwg.mxu0
    %v575 = vpack.c.bf16 %v569, %v569
    %v576 = vld [vmem:[#allocation5 + $0x10] sm:$0xf]
    %v577 = vld [vmem:[#allocation5 + $0x14] sm:$0xf]
    %v580 = vunpack.c.l.b16 %v576
    %v581 = vunpack.c.l.b16 %v577
    %v582 = vpack.c.b16 %v581, %v580
    %v585 = vsel %vm221, %v575, 0
    %587 = vmatprep.subr.bf16.mxu0 0
    %588 = vmatpush1.bf16.msra.mxu0 %v582
    %589 = vmatprep.subr.bf16.mxu0 0
    %590 = vmatpush1.bf16.msra.mxu0 0
    %591 = vmatprep.subr.bf16.mxu0 0
    %592 = vmatpush1.bf16.msra.mxu0 0
    %593 = vmatprep.subr.bf16.mxu0 0
    %594 = vmatpush1.bf16.msra.mxu0 0
    %595 = vmatprep.subr.bf16.mxu0 0
    %596 = vmatpush1.bf16.msra.mxu0 0
    %597 = vmatprep.subr.bf16.mxu0 0
    %598 = vmatpush1.bf16.msra.mxu0 0
    %599 = vmatprep.subr.bf16.mxu0 0
    %600 = vmatpush1.bf16.msra.mxu0 0
    %601 = vmatprep.subr.bf16.mxu0 0
    %602 = vmatpush1.bf16.msra.mxu0 0
    %603 = vmatprep.subr.bf16.mxu0 0
    %604 = vmatpush1.bf16.msra.mxu0 0
    %605 = vmatprep.subr.bf16.mxu0 0
    %606 = vmatpush1.bf16.msra.mxu0 0
    %607 = vmatprep.subr.bf16.mxu0 0
    %608 = vmatpush1.bf16.msra.mxu0 0
    %609 = vmatprep.subr.bf16.mxu0 0
    %610 = vmatpush1.bf16.msra.mxu0 0
    %611 = vmatprep.subr.bf16.mxu0 0
    %612 = vmatpush1.bf16.msra.mxu0 0
    %613 = vmatprep.subr.bf16.mxu0 0
    %614 = vmatpush1.bf16.msra.mxu0 0
    %615 = vmatprep.subr.bf16.mxu0 0
    %616 = vmatpush1.bf16.msra.mxu0 0
    %617 = vmatprep.subr.bf16.mxu0 0
    %618 = vmatpush1.bf16.msra.mxu0 0
    %619 = vmatprep.mubr.bf16.mxu0 0
    %620 = vmatmul.mubr.bf16.gmra.mrb[0].mxu0 %v585
    %v621 = vpop.f32.mrb[0].mxu0
    %v622 = vadd.f32 0.0, %v621
    %v623 = vpop.f32.mrb[0].mxu0
    %v624 = vpop.f32.mrb[0].mxu0
    %v625 = vpop.f32.mrb[0].mxu0
    %626 = vdwg.mxu0
    %v627 = vadd.f32 %v444, %v622
    %v628 = vpack.c.bf16 %v572, %v572
    %v629 = vld [vmem:[#allocation5 + $0x18] sm:$0xf]
    %v630 = vld [vmem:[#allocation5 + $0x1c] sm:$0xf]
    %v633 = vunpack.c.l.b16 %v629
    %v634 = vunpack.c.l.b16 %v630
    %v635 = vpack.c.b16 %v634, %v633
    %v638 = vsel %vm221, %v628, 0
    %640 = vmatprep.subr.bf16.mxu0 0
    %641 = vmatpush1.bf16.msra.mxu0 %v635
    %642 = vmatprep.subr.bf16.mxu0 0
    %643 = vmatpush1.bf16.msra.mxu0 0
    %644 = vmatprep.subr.bf16.mxu0 0
    %645 = vmatpush1.bf16.msra.mxu0 0
    %646 = vmatprep.subr.bf16.mxu0 0
    %647 = vmatpush1.bf16.msra.mxu0 0
    %648 = vmatprep.subr.bf16.mxu0 0
    %649 = vmatpush1.bf16.msra.mxu0 0
    %650 = vmatprep.subr.bf16.mxu0 0
    %651 = vmatpush1.bf16.msra.mxu0 0
    %652 = vmatprep.subr.bf16.mxu0 0
    %653 = vmatpush1.bf16.msra.mxu0 0
    %654 = vmatprep.subr.bf16.mxu0 0
    %655 = vmatpush1.bf16.msra.mxu0 0
    %656 = vmatprep.subr.bf16.mxu0 0
    %657 = vmatpush1.bf16.msra.mxu0 0
    %658 = vmatprep.subr.bf16.mxu0 0
    %659 = vmatpush1.bf16.msra.mxu0 0
    %660 = vmatprep.subr.bf16.mxu0 0
    %661 = vmatpush1.bf16.msra.mxu0 0
    %662 = vmatprep.subr.bf16.mxu0 0
    %663 = vmatpush1.bf16.msra.mxu0 0
    %664 = vmatprep.subr.bf16.mxu0 0
    %665 = vmatpush1.bf16.msra.mxu0 0
    %666 = vmatprep.subr.bf16.mxu0 0
    %667 = vmatpush1.bf16.msra.mxu0 0
    %668 = vmatprep.subr.bf16.mxu0 0
    %669 = vmatpush1.bf16.msra.mxu0 0
    %670 = vmatprep.subr.bf16.mxu0 0
    %671 = vmatpush1.bf16.msra.mxu0 0
    %672 = vmatprep.mubr.bf16.mxu0 0
    %673 = vmatmul.mubr.bf16.gmra.mrb[0].mxu0 %v638
    %v674 = vpop.f32.mrb[0].mxu0
    %v675 = vadd.f32 0.0, %v674
    %v676 = vpop.f32.mrb[0].mxu0
    %v677 = vpop.f32.mrb[0].mxu0
    %v678 = vpop.f32.mrb[0].mxu0
    %679 = vdwg.mxu0
    %v680 = vadd.f32 %v627, %v675
    %v681 = vadd.f32 %v680, %v61
    %682 = vst.msk [vmem:[#allocation8] sm:$0xff] %vm63, %v681
    %v683 = vmul.f32 %v681, %v681
    %v684 = vsel %vm63, %v683, 0.0
    %685 = vadd.xlane.f32.xlu0 %v684
    %v686 = vpop.xlane.xlu0 %685
    %v687 = vmul.f32 %v686, %v67
    %v688 = vadd.f32 %v687, 1e-06
    %v689 = vrsqrt.pop %v688
    %v690 = vmul.f32 %v681, %v689
    %v691 = vld [vmem:[%s2] sm:$0x1]
    %v693 = vlaneseq
    %v694 = vshrl.u32 %v693, 7
    %v695 = vsub.s32 0, %v694
    %v696 = vrot.slane %v691, %v695
    %v698 = vmul.f32 %v690, %v696
    %v699 = vpack.c.bf16 %v698, %v698
    %vm700 = vcmask 519168
    %701 = vst.msk [vmem:[#allocation7] sm:$0xf] %vm700, %v699
    %v702 = vld [vmem:[%s7] sm:$0xf]
    %v703 = vld [vmem:[%s7 + $0x4] sm:$0xf]
    %v704 = vld [vmem:[%s7 + $0x8] sm:$0xf]
    %v705 = vld [vmem:[%s7 + $0xc] sm:$0xf]
    %v706 = vld [vmem:[%s7 + $0x10] sm:$0xf]
    %v707 = vld [vmem:[%s7 + $0x14] sm:$0xf]
    %v708 = vld [vmem:[%s7 + $0x18] sm:$0xf]
    %v709 = vld [vmem:[%s7 + $0x1c] sm:$0xf]
    %v718 = vunpack.c.l.b16 %v702
    %v719 = vunpack.c.l.b16 %v703
    %v720 = vunpack.c.l.b16 %v704
    %v721 = vunpack.c.l.b16 %v705
    %v722 = vunpack.c.l.b16 %v706
    %v723 = vunpack.c.l.b16 %v707
    %v724 = vunpack.c.l.b16 %v708
    %v725 = vunpack.c.l.b16 %v709
    %v726 = vpack.c.b16 %v719, %v718
    %v727 = vpack.c.b16 %v721, %v720
    %v728 = vpack.c.b16 %v723, %v722
    %v729 = vpack.c.b16 %v725, %v724
    %v735 = vsel %vm63, %v699, 0
    %737 = vmatprep.subr.bf16.mxu0 0
    %738 = vmatpush1.bf16.msra.mxu0 %v726
    %739 = vmatprep.subr.bf16.mxu0 0
    %740 = vmatpush1.bf16.msra.mxu0 %v727
    %741 = vmatprep.subr.bf16.mxu0 0
    %742 = vmatpush1.bf16.msra.mxu0 %v728
    %743 = vmatprep.subr.bf16.mxu0 0
    %744 = vmatpush1.bf16.msra.mxu0 %v729
    %745 = vmatprep.subr.bf16.mxu0 0
    %746 = vmatpush1.bf16.msra.mxu0 0
    %747 = vmatprep.subr.bf16.mxu0 0
    %748 = vmatpush1.bf16.msra.mxu0 0
    %749 = vmatprep.subr.bf16.mxu0 0
    %750 = vmatpush1.bf16.msra.mxu0 0
    %751 = vmatprep.subr.bf16.mxu0 0
    %752 = vmatpush1.bf16.msra.mxu0 0
    %753 = vmatprep.subr.bf16.mxu0 0
    %754 = vmatpush1.bf16.msra.mxu0 0
    %755 = vmatprep.subr.bf16.mxu0 0
    %756 = vmatpush1.bf16.msra.mxu0 0
    %757 = vmatprep.subr.bf16.mxu0 0
    %758 = vmatpush1.bf16.msra.mxu0 0
    %759 = vmatprep.subr.bf16.mxu0 0
    %760 = vmatpush1.bf16.msra.mxu0 0
    %761 = vmatprep.subr.bf16.mxu0 0
    %762 = vmatpush1.bf16.msra.mxu0 0
    %763 = vmatprep.subr.bf16.mxu0 0
    %764 = vmatpush1.bf16.msra.mxu0 0
    %765 = vmatprep.subr.bf16.mxu0 0
    %766 = vmatpush1.bf16.msra.mxu0 0
    %767 = vmatprep.subr.bf16.mxu0 0
    %768 = vmatpush1.bf16.msra.mxu0 0
    %769 = vmatprep.mubr.bf16.mxu0 0
    %770 = vmatmul.mubr.bf16.gmra.mrb[0].mxu0 %v735
    %v771 = vpop.f32.mrb[0].mxu0
    %v772 = vadd.f32 0.0, %v771
    %v773 = vpop.f32.mrb[0].mxu0
    %v774 = vpop.f32.mrb[0].mxu0
    %v775 = vpop.f32.mrb[0].mxu0
    %776 = vdwg.mxu0
    %vm777 = vcmask 31744
    %778 = vst.msk [vmem:[%s10] sm:$0xff] %vm777, %v772
    // Predicated region
    $region42: #{tpu_custom_call.1} parent=1 // pred_check
      _
    $region43: #{tpu_custom_call.1} parent=1 // pred_check_branch
      %780 = sbr.rel (0) target = $region45
    $region44: #{tpu_custom_call.1} parent=1 // pred_region
      %s782 = ssub.s32 64, 64
      %783 = vsyncadd [#allocation4], %s782
      %s785 = sshll.u32 [#allocation7], 4
      %s786 = int_to_ptr.vmem [resolvable:$true] %s785
      %788 = dma.vmem_to_hbm [thread:$0]  %s786, 64, %s8, [#allocation4]
    $region45: #{tpu_custom_call.1} parent=1 // pred_fallthru
      _
    // Predicated region
    $region46: #{tpu_custom_call.1} parent=1 // pred_check
      _
    $region47: #{tpu_custom_call.1} parent=1 // pred_check_branch
      %790 = sbr.rel (0) target = $region49
    $region48: #{tpu_custom_call.1} parent=1 // pred_region
      %s792 = ssub.s32 128, 128
      %793 = vsyncadd [#allocation9], %s792
      %s795 = sshll.u32 [#allocation8], 4
      %s796 = int_to_ptr.vmem [resolvable:$true] %s795
      %798 = dma.vmem_to_hbm [thread:$0]  %s796, 128, %s9, [#allocation9]
    $region49: #{tpu_custom_call.1} parent=1 // pred_fallthru
      _
    // Predicated region
    $region50: #{tpu_custom_call.1} parent=1 // pred_check
      _
    $region51: #{tpu_custom_call.1} parent=1 // pred_check_branch
      %800 = sbr.rel (0) target = $region53
    $region52: #{tpu_custom_call.1} parent=1 // pred_region
      _
    $region53: #{tpu_custom_call.1} parent=1 // pred_fallthru
      _
    // Predicated region
    $region54: #{tpu_custom_call.1} parent=1 // pred_check
      _
    $region55: #{tpu_custom_call.1} parent=1 // pred_check_branch
      %802 = sbr.rel (0) target = $region57
    $region56: #{tpu_custom_call.1} parent=1 // pred_region
      %803 = dma.done [#allocation4], 64
    $region57: #{tpu_custom_call.1} parent=1 // pred_fallthru
      _
    // Predicated region
    $region58: #{tpu_custom_call.1} parent=1 // pred_check
      _
    $region59: #{tpu_custom_call.1} parent=1 // pred_check_branch
      %805 = sbr.rel (0) target = $region61
    $region60: #{tpu_custom_call.1} parent=1 // pred_region
      %806 = dma.done [#allocation9], 128
    $region61: #{tpu_custom_call.1} parent=1 // pred_fallthru
      _
    // Predicated region
    $region62: #{tpu_custom_call.1} parent=1 // pred_check
      _
    $region63: #{tpu_custom_call.1} parent=1 // pred_check_branch
      %808 = sbr.rel (0) target = $region65
    $region64: #{tpu_custom_call.1} parent=1 // pred_region
      _
    $region65: #{tpu_custom_call.1} parent=1 // pred_fallthru
      _
    %809 = vsyncpa [#allocation3], 1
    %810 = vsyncpa [#allocation6], 1
    %811 = vsyncpa [#allocation4], 1
    %812 = vsyncpa [#allocation9], 1

</llo_original>
